<compile_context>
chip_gen: v5e
topology: v5e:2x2
jax: 0.10.0
libtpu: 0.0.40
codegen_flags: <defaults>
</compile_context>

<pallas_src>
import functools

import jax
import jax.numpy as jnp
import numpy as np
from jax.experimental import pallas as pl
from jax.experimental.pallas import tpu as pltpu


_FUSED_SLAB_CAP = 4 * 1024 * 1024     # per-sample (C, HW) slab for the fused path
_POOL_BLOCK_CAP = 4 * 1024 * 1024     # per-step x block, fallback pool pass
_EXCITE_BLOCK_CAP = 4 * 1024 * 1024   # per-step x block, fallback excite pass
_VMEM_LIMIT = 32 * 1024 * 1024        # explicit scoped-VMEM limit (safe on v5e/v6e/v7x)


def _lane_tile(total, cap):
    """Lane-axis block: full dim if it fits, else largest multiple of 128 <= cap."""
    if total <= cap:
        return total
    return max(128, (cap // 128) * 128)


def _sub_tile(total, cap):
    """Sublane-axis block: full dim if it fits, else largest multiple of 8 <= cap."""
    if total <= cap:
        return total
    return max(8, (cap // 8) * 8)


def _se_mlp(pooled, w1t_ref, b1_ref, w2_ref, b2_ref):
    """Squeeze/excite MLP on the VPU.  pooled: (C, 1) f32 -> scale (C, 1) f32.

    w1t: (C, S) = fc1 weight transposed, w2: (C, S) = fc2 weight (natural layout).
    Uses only lane/sublane broadcasts and reductions (no tiny MXU matmuls, no
    in-kernel transposes), which lowers robustly and is negligible work.
    """
    t1 = w1t_ref[...] * pooled                                   # (C, S)
    s1 = jnp.sum(t1, axis=0, keepdims=True) + b1_ref[...]        # (1, S)
    s1 = s1 * jax.nn.sigmoid(s1)                                 # SiLU
    t2 = w2_ref[...] * s1                                        # (C, S)
    s2 = jnp.sum(t2, axis=-1, keepdims=True) + b2_ref[...]       # (C, 1)
    return jax.nn.sigmoid(s2)                                    # (C, 1) f32


# ---------------------------------------------------------------------------
# Fast path: fully fused pool + MLP + excite, one sample slab per grid step.
# ---------------------------------------------------------------------------
def _se_fused_kernel(x_ref, w1t_ref, b1_ref, w2_ref, b2_ref, o_ref,
                     *, inv_hw, fold_chunks):
    # --- pool: per-channel mean over HW (f32 accumulation) ------------------
    if fold_chunks >= 2:
        # Accumulate 128-lane chunks with VPU adds; one XLU lane-reduce at the end.
        part = x_ref[0, :, 0:128].astype(jnp.float32)
        for j in range(1, fold_chunks):
            part = part + x_ref[0, :, j * 128:(j + 1) * 128].astype(jnp.float32)
        pooled = jnp.sum(part, axis=-1, keepdims=True) * inv_hw           # (C, 1)
    else:
        pooled = jnp.sum(x_ref[0], axis=-1, keepdims=True,
                         dtype=jnp.float32) * inv_hw                      # (C, 1)

    # --- squeeze/excite MLP --------------------------------------------------
    scale = _se_mlp(pooled, w1t_ref, b1_ref, w2_ref, b2_ref)              # (C, 1)

    # --- excite: broadcast multiply in the input dtype -----------------------
    o_ref[0] = x_ref[0] * scale.astype(o_ref.dtype)


# ---------------------------------------------------------------------------
# Fallback Pass A: pool + MLP fused (MLP in the finalize step).
# ---------------------------------------------------------------------------
def _se_pool_mlp_kernel(x_ref, w1t_ref, b1_ref, w2_ref, b2_ref, scale_ref, acc_ref,
                        *, inv_hw, hw, thw, fold):
    h = pl.program_id(1)

    @pl.when(h == 0)
    def _init():
        acc_ref[...] = jnp.zeros_like(acc_ref)

    if fold:
        # Per-step VPU accumulation into a (C, 128) f32 scratch.
        part = x_ref[0, :, 0:128].astype(jnp.float32)
        for j in range(1, thw // 128):
            part = part + x_ref[0, :, j * 128:(j + 1) * 128].astype(jnp.float32)
        acc_ref[...] += part                                               # (C, 128)
    else:
        x = x_ref[0]                                                       # (C, thw)
        if hw % thw != 0:
            # Tail block of a cdiv grid: zero out the padded lanes.
            lane = jax.lax.broadcasted_iota(jnp.int32, x.shape, 1)
            x = jnp.where(h * thw + lane < hw, x, jnp.zeros_like(x))
        acc_ref[...] += jnp.sum(x, axis=-1, keepdims=True,
                                dtype=jnp.float32)                         # (C, 1)

    @pl.when(h == pl.num_programs(1) - 1)
    def _finalize():
        pooled = jnp.sum(acc_ref[...], axis=-1, keepdims=True) * inv_hw    # (C, 1)
        scale_ref[0] = _se_mlp(pooled, w1t_ref, b1_ref, w2_ref, b2_ref)    # (C, 1)


# ---------------------------------------------------------------------------
# Fallback Pass B: excite -- lane-dense broadcast multiply in input dtype.
# ---------------------------------------------------------------------------
def _se_excite_kernel(x_ref, scale_ref, o_ref):
    o_ref[...] = x_ref[...] * scale_ref[...].astype(o_ref.dtype)


def squeeze_excitation(x_nchw, w1, b1, w2, b2, *, force_fallback=False):
    """x_nchw: (N, C, H, W); w1: (S, C, 1, 1); b1: (S,); w2: (C, S, 1, 1); b2: (C,)."""
    N, C, H, W = x_nchw.shape
    S = w1.shape[0]
    HW = H * W
    itemsize = jnp.dtype(x_nchw.dtype).itemsize

    # Free, layout-preserving reshape (no NCHW <-> NHWC transpose of x).
    x3 = x_nchw.reshape(N, C, HW)

    # Tiny f32 weight views; constant index_maps keep them VMEM-resident.
    w1t = jnp.transpose(w1.reshape(S, C)).astype(jnp.float32)   # (C, S)
    w2m = w2.reshape(C, S).astype(jnp.float32)                  # (C, S)
    b1m = b1.reshape(1, S).astype(jnp.float32)                  # (1, S)
    b2m = b2.reshape(C, 1).astype(jnp.float32)                  # (C, 1)

    slab_bytes = C * HW * itemsize

    # ======================= fused single-kernel fast path ===================
    if (not force_fallback) and slab_bytes <= _FUSED_SLAB_CAP:
        # TODO(synk): for HW < 128 (e.g. 7x7 tails) a (N, C*HW) lane-dense output
        # view would avoid masked partial stores; current blocks are still correct.
        fold_chunks = HW // 128 if (HW % 128 == 0 and 2 <= HW // 128 <= 64) else 1
        out3 = pl.pallas_call(
            functools.partial(_se_fused_kernel, inv_hw=1.0 / HW,
                              fold_chunks=fold_chunks),
            out_shape=jax.ShapeDtypeStruct((N, C, HW), x_nchw.dtype),
            grid_spec=pltpu.PrefetchScalarGridSpec(
                num_scalar_prefetch=0,
                grid=(N,),
                in_specs=[
                    pl.BlockSpec((1, C, HW), lambda n: (n, 0, 0)),
                    pl.BlockSpec((C, S), lambda n: (0, 0)),
                    pl.BlockSpec((1, S), lambda n: (0, 0)),
                    pl.BlockSpec((C, S), lambda n: (0, 0)),
                    pl.BlockSpec((C, 1), lambda n: (0, 0)),
                ],
                out_specs=pl.BlockSpec((1, C, HW), lambda n: (n, 0, 0)),
            ),
            compiler_params=pltpu.CompilerParams(
                dimension_semantics=("parallel",),
                vmem_limit_bytes=_VMEM_LIMIT),
        )(x3, w1t, b1m, w2m, b2m)
        return out3.reshape(N, C, H, W)

    # ======================= fallback: 2-pass path ===========================
    # ---- Pass A: pool + MLP -> scale (N, C, 1) f32 --------------------------
    lane_cap = max(128, (_POOL_BLOCK_CAP // max(1, C * itemsize)) // 128 * 128)
    thw_p = _lane_tile(HW, lane_cap)
    n_h = pl.cdiv(HW, thw_p)
    fold = (HW % thw_p == 0) and (thw_p % 128 == 0) and (2 <= thw_p // 128 <= 64)
    acc_shape = (C, 128) if fold else (C, 1)

    scale = pl.pallas_call(
        functools.partial(_se_pool_mlp_kernel, inv_hw=1.0 / HW,
                          hw=HW, thw=thw_p, fold=fold),
        out_shape=jax.ShapeDtypeStruct((N, C, 1), jnp.float32),
        grid_spec=pltpu.PrefetchScalarGridSpec(
            num_scalar_prefetch=0,
            grid=(N, n_h),
            in_specs=[
                pl.BlockSpec((1, C, thw_p), lambda n, h: (n, 0, h)),
                pl.BlockSpec((C, S), lambda n, h: (0, 0)),
                pl.BlockSpec((1, S), lambda n, h: (0, 0)),
                pl.BlockSpec((C, S), lambda n, h: (0, 0)),
                pl.BlockSpec((C, 1), lambda n, h: (0, 0)),
            ],
            out_specs=pl.BlockSpec((1, C, 1), lambda n, h: (n, 0, 0)),
            scratch_shapes=[pltpu.VMEM(acc_shape, jnp.float32)],
        ),
        compiler_params=pltpu.CompilerParams(
            dimension_semantics=("parallel", "arbitrary"),
            vmem_limit_bytes=_VMEM_LIMIT),
    )(x3, w1t, b1m, w2m, b2m)

    # ---- Pass B: out = x * scale (big lane-dense tiles, both axes parallel) -
    R = N * C
    x2 = x3.reshape(R, HW)           # free reshape
    scale2 = scale.reshape(R, 1)     # free reshape (tiny)
    thw = _lane_tile(HW, 4096)
    row_cap = max(8, (_EXCITE_BLOCK_CAP // max(1, thw * itemsize)) // 8 * 8)
    tr = _sub_tile(R, min(512, row_cap))

    out2 = pl.pallas_call(
        _se_excite_kernel,
        out_shape=jax.ShapeDtypeStruct((R, HW), x_nchw.dtype),
        grid_spec=pltpu.PrefetchScalarGridSpec(
            num_scalar_prefetch=0,
            grid=(pl.cdiv(R, tr), pl.cdiv(HW, thw)),
            in_specs=[
                pl.BlockSpec((tr, thw), lambda r, h: (r, h)),
                pl.BlockSpec((tr, 1), lambda r, h: (r, 0)),
            ],
            out_specs=pl.BlockSpec((tr, thw), lambda r, h: (r, h)),
        ),
        compiler_params=pltpu.CompilerParams(
            dimension_semantics=("parallel", "parallel"),
            vmem_limit_bytes=_VMEM_LIMIT),
    )(x2, scale2)

    return out2.reshape(N, C, H, W)


def _reference(x, w1, b1, w2, b2):
    N, C, H, W = x.shape
    S = w1.shape[0]
    pooled = jnp.mean(x, axis=(2, 3))                         # (N, C)
    s1 = pooled @ w1.reshape(S, C).T + b1                     # (N, S)
    s1 = s1 * jax.nn.sigmoid(s1)                              # SiLU
    s2 = s1 @ w2.reshape(C, S).T + b2                         # (N, C)
    scale = jax.nn.sigmoid(s2)
    return x * scale[:, :, None, None]


if __name__ == "__main__":
    key = jax.random.PRNGKey(0)
    kx, kw1, kb1, kw2, kb2 = jax.random.split(key, 5)

    N, C, S, H, W = 2, 16, 4, 16, 16   # input_channels=16, squeeze_channels=4

    x = jax.random.normal(kx, (N, C, H, W), dtype=jnp.float32)
    w1 = jax.random.normal(kw1, (S, C, 1, 1), dtype=jnp.float32) * 0.1
    b1 = jax.random.normal(kb1, (S,), dtype=jnp.float32) * 0.1
    w2 = jax.random.normal(kw2, (C, S, 1, 1), dtype=jnp.float32) * 0.1
    b2 = jax.random.normal(kb2, (C,), dtype=jnp.float32) * 0.1

    ref = _reference(x, w1, b1, w2, b2)

    # Fused fast path (default for these shapes).
    out_fused = jax.block_until_ready(squeeze_excitation(x, w1, b1, w2, b2))
    np.testing.assert_allclose(np.asarray(out_fused), np.asarray(ref),
                               rtol=1e-5, atol=1e-5)

    # Large-shape fallback path (forced here to validate it as well).
    out_fb = jax.block_until_ready(
        squeeze_excitation(x, w1, b1, w2, b2, force_fallback=True))
    np.testing.assert_allclose(np.asarray(out_fb), np.asarray(ref),
                               rtol=1e-5, atol=1e-5)

    print("KERNEL_OK")
</pallas_src>

<mosaic_0001>
module attributes {stable_mosaic.version = 11 : i64} {
  func.func @_se_fused_kernel(%arg0: i32, %arg1: memref<1x16x256xf32, #tpu.memory_space<vmem>>, %arg2: memref<16x4xf32, #tpu.memory_space<vmem>>, %arg3: memref<1x4xf32, #tpu.memory_space<vmem>>, %arg4: memref<16x4xf32, #tpu.memory_space<vmem>>, %arg5: memref<16x1xf32, #tpu.memory_space<vmem>>, %arg6: memref<1x16x256xf32, #tpu.memory_space<vmem>>) attributes {dimension_semantics = [#tpu.dimension_semantics<parallel>], iteration_bounds = array<i64: 2>, scalar_prefetch = 0 : i64, scratch_operands = 0 : i64, tpu.core_type = #tpu.core_type<tc>, window_params = [{transform_indices = @transform_0, window_bounds = array<i64: 1, 16, 256>}, {pipeline_mode = #tpu.pipeline_mode<synchronous>, transform_indices = @transform_1, window_bounds = array<i64: 16, 4>}, {pipeline_mode = #tpu.pipeline_mode<synchronous>, transform_indices = @transform_2, window_bounds = array<i64: 1, 4>}, {pipeline_mode = #tpu.pipeline_mode<synchronous>, transform_indices = @transform_3, window_bounds = array<i64: 16, 4>}, {pipeline_mode = #tpu.pipeline_mode<synchronous>, transform_indices = @transform_4, window_bounds = array<i64: 16, 1>}, {transform_indices = @transform_5, window_bounds = array<i64: 1, 16, 256>}]} {
    %c0 = arith.constant 0 : index
    %c0_0 = arith.constant 0 : index
    %c0_1 = arith.constant 0 : index
    %0 = vector.load %arg1[%c0, %c0_0, %c0_1] : memref<1x16x256xf32, #tpu.memory_space<vmem>>, vector<1x16x128xf32>
    %1 = vector.shape_cast %0 : vector<1x16x128xf32> to vector<16x128xf32>
    %c0_2 = arith.constant 0 : index
    %c0_3 = arith.constant 0 : index
    %c128 = arith.constant 128 : index
    %2 = vector.load %arg1[%c0_2, %c0_3, %c128] : memref<1x16x256xf32, #tpu.memory_space<vmem>>, vector<1x16x128xf32>
    %3 = vector.shape_cast %2 : vector<1x16x128xf32> to vector<16x128xf32>
    %4 = arith.addf %1, %3 : vector<16x128xf32>
    %cst = arith.constant dense<0.000000e+00> : vector<16xf32>
    %5 = vector.multi_reduction <add>, %4, %cst [1] : vector<16x128xf32> to vector<16xf32>
    %6 = vector.shape_cast %5 : vector<16xf32> to vector<16x1xf32>
    %cst_4 = arith.constant 3.906250e-03 : f32
    %7 = vector.broadcast %cst_4 : f32 to vector<16x1xf32>
    %8 = arith.mulf %6, %7 : vector<16x1xf32>
    %c0_5 = arith.constant 0 : index
    %c0_6 = arith.constant 0 : index
    %9 = vector.load %arg2[%c0_5, %c0_6] : memref<16x4xf32, #tpu.memory_space<vmem>>, vector<16x4xf32>
    %10 = vector.broadcast %8 : vector<16x1xf32> to vector<16x4xf32>
    %11 = arith.mulf %9, %10 : vector<16x4xf32>
    %cst_7 = arith.constant dense<0.000000e+00> : vector<4xf32>
    %12 = vector.multi_reduction <add>, %11, %cst_7 [0] : vector<16x4xf32> to vector<4xf32>
    %13 = vector.shape_cast %12 : vector<4xf32> to vector<1x4xf32>
    %c0_8 = arith.constant 0 : index
    %c0_9 = arith.constant 0 : index
    %14 = vector.load %arg3[%c0_8, %c0_9] : memref<1x4xf32, #tpu.memory_space<vmem>>, vector<1x4xf32>
    %15 = arith.addf %13, %14 : vector<1x4xf32>
    %16 = arith.negf %15 : vector<1x4xf32>
    %17 = math.exp %16 : vector<1x4xf32>
    %cst_10 = arith.constant 1.000000e+00 : f32
    %18 = vector.broadcast %cst_10 : f32 to vector<1x4xf32>
    %19 = arith.addf %18, %17 : vector<1x4xf32>
    %20 = arith.divf %18, %19 : vector<1x4xf32>
    %21 = arith.mulf %15, %20 : vector<1x4xf32>
    %c0_11 = arith.constant 0 : index
    %c0_12 = arith.constant 0 : index
    %22 = vector.load %arg4[%c0_11, %c0_12] : memref<16x4xf32, #tpu.memory_space<vmem>>, vector<16x4xf32>
    %23 = vector.broadcast %21 : vector<1x4xf32> to vector<16x4xf32>
    %24 = arith.mulf %22, %23 : vector<16x4xf32>
    %cst_13 = arith.constant dense<0.000000e+00> : vector<16xf32>
    %25 = vector.multi_reduction <add>, %24, %cst_13 [1] : vector<16x4xf32> to vector<16xf32>
    %26 = vector.shape_cast %25 : vector<16xf32> to vector<16x1xf32>
    %c0_14 = arith.constant 0 : index
    %c0_15 = arith.constant 0 : index
    %27 = vector.load %arg5[%c0_14, %c0_15] : memref<16x1xf32, #tpu.memory_space<vmem>>, vector<16x1xf32>
    %28 = arith.addf %26, %27 : vector<16x1xf32>
    %29 = arith.negf %28 : vector<16x1xf32>
    %30 = math.exp %29 : vector<16x1xf32>
    %cst_16 = arith.constant 1.000000e+00 : f32
    %31 = vector.broadcast %cst_16 : f32 to vector<16x1xf32>
    %32 = arith.addf %31, %30 : vector<16x1xf32>
    %33 = arith.divf %31, %32 : vector<16x1xf32>
    %c0_17 = arith.constant 0 : index
    %c0_18 = arith.constant 0 : index
    %c0_19 = arith.constant 0 : index
    %34 = vector.load %arg1[%c0_17, %c0_18, %c0_19] : memref<1x16x256xf32, #tpu.memory_space<vmem>>, vector<1x16x256xf32>
    %35 = vector.shape_cast %34 : vector<1x16x256xf32> to vector<16x256xf32>
    %36 = vector.broadcast %33 : vector<16x1xf32> to vector<16x256xf32>
    %37 = arith.mulf %35, %36 : vector<16x256xf32>
    %c0_20 = arith.constant 0 : index
    %c0_21 = arith.constant 0 : index
    %c0_22 = arith.constant 0 : index
    %38 = vector.load %arg6[%c0_20, %c0_21, %c0_22] : memref<1x16x256xf32, #tpu.memory_space<vmem>>, vector<1x16x256xf32>
    %39 = vector.shape_cast %38 : vector<1x16x256xf32> to vector<16x256xf32>
    %40 = vector.shape_cast %37 : vector<16x256xf32> to vector<1x16x256xf32>
    tpu.vector_store %arg6[%c0_20, %c0_21, %c0_22], %40 {strides = array<i32>} : memref<1x16x256xf32, #tpu.memory_space<vmem>>, vector<1x16x256xf32>,
    return
  }
  func.func @transform_0(%arg0: i32) -> (i32, i32, i32) {
    %c0_i32 = arith.constant 0 : i32
    %c0_i32_0 = arith.constant 0 : i32
    %c0_i32_1 = arith.constant 0 : i32
    return %arg0, %c0_i32, %c0_i32_0 : i32, i32, i32
  }
  func.func @transform_1(%arg0: i32) -> (i32, i32) {
    %c0_i32 = arith.constant 0 : i32
    %c0_i32_0 = arith.constant 0 : i32
    %c0_i32_1 = arith.constant 0 : i32
    return %c0_i32, %c0_i32_0 : i32, i32
  }
  func.func @transform_2(%arg0: i32) -> (i32, i32) {
    %c0_i32 = arith.constant 0 : i32
    %c0_i32_0 = arith.constant 0 : i32
    %c0_i32_1 = arith.constant 0 : i32
    return %c0_i32, %c0_i32_0 : i32, i32
  }
  func.func @transform_3(%arg0: i32) -> (i32, i32) {
    %c0_i32 = arith.constant 0 : i32
    %c0_i32_0 = arith.constant 0 : i32
    %c0_i32_1 = arith.constant 0 : i32
    return %c0_i32, %c0_i32_0 : i32, i32
  }
  func.func @transform_4(%arg0: i32) -> (i32, i32) {
    %c0_i32 = arith.constant 0 : i32
    %c0_i32_0 = arith.constant 0 : i32
    %c0_i32_1 = arith.constant 0 : i32
    return %c0_i32, %c0_i32_0 : i32, i32
  }
  func.func @transform_5(%arg0: i32) -> (i32, i32, i32) {
    %c0_i32 = arith.constant 0 : i32
    %c0_i32_0 = arith.constant 0 : i32
    %c0_i32_1 = arith.constant 0 : i32
    return %arg0, %c0_i32, %c0_i32_0 : i32, i32, i32
  }
}

</mosaic_0001>

<llo_original>
// kernel: tpu_custom_call.1
$region0: #{tpu_custom_call.1}
  #allocation0 [shape = 'u32[]', space=smem, size = 0x4, offset = 0x4, fixed_abs, tag = 'smem constant byte address 0x4 - core index']
  #allocation1 [shape = 'u32[72,128]{1,0:T(1,128)}', space=vmem, size = 0x9000, scoped, tag = 'internal scratch']
  %s0 = inlined_call_operand.hbm [shape: f32[2,16,256], index: 0, kind: input, shape index: {}]
  %s1 = inlined_call_operand.vmem [shape: f32[16,4], index: 1, kind: input, shape index: {}]
  %s2 = inlined_call_operand.vmem [shape: f32[1,4], index: 2, kind: input, shape index: {}]
  %s3 = inlined_call_operand.vmem [shape: f32[16,4], index: 3, kind: input, shape index: {}]
  %s4 = inlined_call_operand.vmem [shape: f32[16,1], index: 4, kind: input, shape index: {}]
  %s5 = inlined_call_operand.hbm [shape: f32[2,16,256], index: 5, kind: output, shape index: {}]
  %s6 = sld [smem:[#allocation0]]
  $region57: #{tpu_custom_call.1} parent=0
    _
  %s8 = ssub.s32 1, %s6
  %s9 = scalar_select 0, %s8, %s6
  $region1: #{tpu_custom_call.1} parent=0
    #allocation2 [shape = 'u8[32768]{0}', space=vmem, size = 0x8000, scoped, tag = 'input window, operand 0']
    #allocation3 [shape = 's32[2]{0}', space=sflag, size = 0x8, scoped, tag = 'scoped memory for tpu_custom_call.1']
    #allocation4 [shape = 's32[2]{0}', space=sflag, size = 0x8, scoped, tag = 'scoped memory for tpu_custom_call.1']
    #allocation5 [shape = 'u8[32768]{0}', space=vmem, size = 0x8000, scoped, tag = 'output window, operand 0']
    %10 = vsyncpa [#allocation3], 0
    %s11 = scalar_lea.sflag [#allocation3], 1
    %12 = vsyncpa %s11, 0
    %13 = vsyncpa [#allocation4], 0
    %s14 = scalar_lea.sflag [#allocation4], 1
    %15 = vsyncpa %s14, 0
    loop: start=0, step=1, limit=4
    $region2: #{tpu_custom_call.1} parent=1 // loop_pre_header
      _
    $region3: #{tpu_custom_call.1} parent=1 // loop_header
      %s17 = sphi 0, %s21
      %p18 = scmp.ge.s32.totalorder %s17, 4
      %s27 = sphi 0, %s29
      %s30 = sphi 0, %s27
      %s31 = sphi 0, %s30
      %s47 = sphi 0, %s31
      %s51 = sphi 0, %s51
      %s53 = sphi 0, %s51
      %s54 = sphi 0, %s53
      %s68 = sphi 0, %s54
      %s72 = sphi 0, %s72
      %s74 = sphi 0, %s72
      %s75 = sphi 0, %s74
      %s89 = sphi 0, %s75
      %s93 = sphi 0, %s93
      %s95 = sphi 0, %s93
      %s96 = sphi 0, %s95
      %s110 = sphi 0, %s96
      %s114 = sphi 0, %s114
      %s116 = sphi 0, %s114
      %s117 = sphi 0, %s116
      %s131 = sphi 0, %s117
      %s137 = sphi 0, %s139
      %s140 = sphi 0, %s137
      %s141 = sphi 0, %s140
      %s157 = sphi 0, %s141
    $region4: #{tpu_custom_call.1} parent=1 // loop_header_branch
      %20 = sbr.rel (%p18) target = $region8
    $region5: #{tpu_custom_call.1} parent=1 // loop_body
      %s22 = ssub.s32 %s17, 1
      %s23 = ssub.s32 %s17, 2
      %s24 = sadd.s32 %s17, 1
      %s25 = ssub.s32 %s17, %s24
      %p26 = scmp.eq.s32.totalorder %s25, 0
      %s28 = sadd.s32 %s27, 1
      %s29 = scalar_select %p26, %s27, %s28
      %p32 = pneg %p26
      %p33 = scmp.eq.s32.totalorder %s17, 1
      %p34 = por %p32, %p33
      %p35 = scmp.ne.s32.totalorder %s27, %s30
      %p36 = scmp.eq.s32.totalorder %s17, 0
      %p37 = por %p35, %p36
      %p38 = scmp.ne.s32.totalorder %s27, %s30
      %p39 = scmp.eq.s32.totalorder %s22, 1
      %p40 = por %p38, %p39
      %p41 = scmp.ne.s32.totalorder %s30, %s31
      %p42 = scmp.eq.s32.totalorder %s22, 0
      %p43 = por %p41, %p42
      %p44 = scmp.ne.s32.totalorder %s30, %s31
      %p45 = scmp.eq.s32.totalorder %s23, 1
      %p46 = por %p44, %p45
      %p48 = scmp.ne.s32.totalorder %s31, %s47
      %p49 = scmp.eq.s32.totalorder %s23, 0
      %p50 = por %p48, %p49
      %s52 = sadd.s32 %s51, 1
      %p55 = scmp.eq.s32.totalorder %s17, 1
      %p56 = scmp.ne.s32.totalorder %s51, %s53
      %p57 = scmp.eq.s32.totalorder %s17, 0
      %p58 = por %p56, %p57
      %p59 = scmp.ne.s32.totalorder %s51, %s53
      %p60 = scmp.eq.s32.totalorder %s22, 1
      %p61 = por %p59, %p60
      %p62 = scmp.ne.s32.totalorder %s53, %s54
      %p63 = scmp.eq.s32.totalorder %s22, 0
      %p64 = por %p62, %p63
      %p65 = scmp.ne.s32.totalorder %s53, %s54
      %p66 = scmp.eq.s32.totalorder %s23, 1
      %p67 = por %p65, %p66
      %p69 = scmp.ne.s32.totalorder %s54, %s68
      %p70 = scmp.eq.s32.totalorder %s23, 0
      %p71 = por %p69, %p70
      %s73 = sadd.s32 %s72, 1
      %p76 = scmp.eq.s32.totalorder %s17, 1
      %p77 = scmp.ne.s32.totalorder %s72, %s74
      %p78 = scmp.eq.s32.totalorder %s17, 0
      %p79 = por %p77, %p78
      %p80 = scmp.ne.s32.totalorder %s72, %s74
      %p81 = scmp.eq.s32.totalorder %s22, 1
      %p82 = por %p80, %p81
      %p83 = scmp.ne.s32.totalorder %s74, %s75
      %p84 = scmp.eq.s32.totalorder %s22, 0
      %p85 = por %p83, %p84
      %p86 = scmp.ne.s32.totalorder %s74, %s75
      %p87 = scmp.eq.s32.totalorder %s23, 1
      %p88 = por %p86, %p87
      %p90 = scmp.ne.s32.totalorder %s75, %s89
      %p91 = scmp.eq.s32.totalorder %s23, 0
      %p92 = por %p90, %p91
      %s94 = sadd.s32 %s93, 1
      %p97 = scmp.eq.s32.totalorder %s17, 1
      %p98 = scmp.ne.s32.totalorder %s93, %s95
      %p99 = scmp.eq.s32.totalorder %s17, 0
      %p100 = por %p98, %p99
      %p101 = scmp.ne.s32.totalorder %s93, %s95
      %p102 = scmp.eq.s32.totalorder %s22, 1
      %p103 = por %p101, %p102
      %p104 = scmp.ne.s32.totalorder %s95, %s96
      %p105 = scmp.eq.s32.totalorder %s22, 0
      %p106 = por %p104, %p105
      %p107 = scmp.ne.s32.totalorder %s95, %s96
      %p108 = scmp.eq.s32.totalorder %s23, 1
      %p109 = por %p107, %p108
      %p111 = scmp.ne.s32.totalorder %s96, %s110
      %p112 = scmp.eq.s32.totalorder %s23, 0
      %p113 = por %p111, %p112
      %s115 = sadd.s32 %s114, 1
      %p118 = scmp.eq.s32.totalorder %s17, 1
      %p119 = scmp.ne.s32.totalorder %s114, %s116
      %p120 = scmp.eq.s32.totalorder %s17, 0
      %p121 = por %p119, %p120
      %p122 = scmp.ne.s32.totalorder %s114, %s116
      %p123 = scmp.eq.s32.totalorder %s22, 1
      %p124 = por %p122, %p123
      %p125 = scmp.ne.s32.totalorder %s116, %s117
      %p126 = scmp.eq.s32.totalorder %s22, 0
      %p127 = por %p125, %p126
      %p128 = scmp.ne.s32.totalorder %s116, %s117
      %p129 = scmp.eq.s32.totalorder %s23, 1
      %p130 = por %p128, %p129
      %p132 = scmp.ne.s32.totalorder %s117, %s131
      %p133 = scmp.eq.s32.totalorder %s23, 0
      %p134 = por %p132, %p133
      %s135 = ssub.s32 %s17, %s24
      %p136 = scmp.eq.s32.totalorder %s135, 0
      %s138 = sadd.s32 %s137, 1
      %s139 = scalar_select %p136, %s137, %s138
      %p142 = pneg %p136
      %p143 = scmp.eq.s32.totalorder %s17, 1
      %p144 = por %p142, %p143
      %p145 = scmp.ne.s32.totalorder %s137, %s140
      %p146 = scmp.eq.s32.totalorder %s17, 0
      %p147 = por %p145, %p146
      %p148 = scmp.ne.s32.totalorder %s137, %s140
      %p149 = scmp.eq.s32.totalorder %s22, 1
      %p150 = por %p148, %p149
      %p151 = scmp.ne.s32.totalorder %s140, %s141
      %p152 = scmp.eq.s32.totalorder %s22, 0
      %p153 = por %p151, %p152
      %p154 = scmp.ne.s32.totalorder %s140, %s141
      %p155 = scmp.eq.s32.totalorder %s23, 1
      %p156 = por %p154, %p155
      %p158 = scmp.ne.s32.totalorder %s141, %s157
      %p159 = scmp.eq.s32.totalorder %s23, 0
      %p160 = por %p158, %p159
      %p161 = scmp.le.s32.totalorder 1, %s17
      %p162 = scmp.lt.s32.totalorder %s17, 3
      %p163 = pnand %p161, %p162
      %p164 = pneg %p163
      // Predicated region
      $region9: #{tpu_custom_call.1} parent=5 // pred_check
        _
      $region10: #{tpu_custom_call.1} parent=5 // pred_check_branch
        %166 = sbr.rel (%p163) target = $region12
      $region11: #{tpu_custom_call.1} parent=5 // pred_region
        %s167 = ssub.s32 %s17, 1
        // Predicated region
        $region13: #{tpu_custom_call.1} parent=11 // pred_check
          %p168 = pneg %p64
        $region14: #{tpu_custom_call.1} parent=11 // pred_check_branch
          %170 = sbr.rel (%p168) target = $region16
        $region15: #{tpu_custom_call.1} parent=11 // pred_region
          _
        $region16: #{tpu_custom_call.1} parent=11 // pred_fallthru
          _
        // Predicated region
        $region17: #{tpu_custom_call.1} parent=11 // pred_check
          %p171 = pneg %p85
        $region18: #{tpu_custom_call.1} parent=11 // pred_check_branch
          %173 = sbr.rel (%p171) target = $region20
        $region19: #{tpu_custom_call.1} parent=11 // pred_region
          _
        $region20: #{tpu_custom_call.1} parent=11 // pred_fallthru
          _
        // Predicated region
        $region21: #{tpu_custom_call.1} parent=11 // pred_check
          %p174 = pneg %p106
        $region22: #{tpu_custom_call.1} parent=11 // pred_check_branch
          %176 = sbr.rel (%p174) target = $region24
        $region23: #{tpu_custom_call.1} parent=11 // pred_region
          _
        $region24: #{tpu_custom_call.1} parent=11 // pred_fallthru
          _
        // Predicated region
        $region25: #{tpu_custom_call.1} parent=11 // pred_check
          %p177 = pneg %p127
        $region26: #{tpu_custom_call.1} parent=11 // pred_check_branch
          %179 = sbr.rel (%p177) target = $region28
        $region27: #{tpu_custom_call.1} parent=11 // pred_region
          _
        $region28: #{tpu_custom_call.1} parent=11 // pred_fallthru
          _
      $region12: #{tpu_custom_call.1} parent=5 // pred_fallthru
        _
      %p180 = scmp.lt.s32.totalorder %s17, 2
      // Predicated region
      $region29: #{tpu_custom_call.1} parent=5 // pred_check
        %p181 = pneg %p180
      $region30: #{tpu_custom_call.1} parent=5 // pred_check_branch
        %183 = sbr.rel (%p181) target = $region32
      $region31: #{tpu_custom_call.1} parent=5 // pred_region
        // Predicated region
        $region33: #{tpu_custom_call.1} parent=31 // pred_check
          %p184 = pneg %p37
        $region34: #{tpu_custom_call.1} parent=31 // pred_check_branch
          %186 = sbr.rel (%p184) target = $region36
        $region35: #{tpu_custom_call.1} parent=31 // pred_region
          %s187 = sand.u32 %s27, 1
          %s188 = scalar_lea.sflag [#allocation3], %s187
          %s189 = sand.u32 %s27, 1
          %s190 = smul.addr %s189, 32
          %s191 = scalar_lea.vmem [#allocation2], %s190
          %193 = vsyncadd %s188, 0
          %s194 = smul.addr %s17, 4
          %s195 = smul.addr %s194, 8
          %s196 = scalar_lea.hbm %s0, %s195
          %s197 = sshll.u32 %s196, 4
          %s198 = int_to_ptr.hbm [resolvable:$true] %s197
          %s199 = sshll.u32 %s191, 4
          %s200 = int_to_ptr.vmem [resolvable:$true] %s199
          %205 = dma.hbm_to_vmem [thread:$0]  %s198, 512, %s200, %s188, 256, 256, 16
        $region36: #{tpu_custom_call.1} parent=31 // pred_fallthru
          _
      $region32: #{tpu_custom_call.1} parent=5 // pred_fallthru
        _
      %p206 = scmp.le.s32.totalorder 1, %s17
      %p207 = scmp.lt.s32.totalorder %s17, 3
      %p208 = pnand %p206, %p207
      %p209 = pneg %p208
      // Predicated region
      $region37: #{tpu_custom_call.1} parent=5 // pred_check
        _
      $region38: #{tpu_custom_call.1} parent=5 // pred_check_branch
        %211 = sbr.rel (%p208) target = $region40
      $region39: #{tpu_custom_call.1} parent=5 // pred_region
        %s212 = ssub.s32 %s17, 1
        %s213 = sand.u32 %s30, 1
        %s214 = scalar_lea.sflag [#allocation3], %s213
        %s215 = sand.u32 %s30, 1
        %s216 = smul.addr %s215, 32
        %s217 = scalar_lea.vmem [#allocation2], %s216
        // Predicated region
        $region41: #{tpu_custom_call.1} parent=39 // pred_check
          %p218 = pneg %p43
        $region42: #{tpu_custom_call.1} parent=39 // pred_check_branch
          %220 = sbr.rel (%p218) target = $region44
        $region43: #{tpu_custom_call.1} parent=39 // pred_region
          %222 = dma.done %s214, 512
        $region44: #{tpu_custom_call.1} parent=39 // pred_fallthru
          _
        %s223 = sand.u32 %s30, 1
        %s224 = scalar_lea.sflag [#allocation3], %s223
        %s225 = sand.u32 %s30, 1
        %s226 = smul.addr %s225, 32
        %s227 = scalar_lea.vmem [#allocation2], %s226
        %p228 = pneg %p43
        %p229 = pneg %p40
        %p230 = pneg %p64
        %p231 = pneg %p61
        %p232 = pneg %p85
        %p233 = pneg %p82
        %p234 = pneg %p106
        %p235 = pneg %p103
        %p236 = pneg %p127
        %p237 = pneg %p124
        %p238 = pneg %p153
        %p239 = pneg %p150
        %s240 = sand.u32 %s140, 1
        %s241 = scalar_lea.sflag [#allocation4], %s240
        %s242 = sand.u32 %s140, 1
        %s243 = smul.addr %s242, 32
        %s244 = scalar_lea.vmem [#allocation5], %s243
        %v245 = vld [vmem:[%s217] sm:$0xff]
        %v246 = vld [vmem:[%s217 + $0x10] sm:$0xff]
        %v247 = vld [vmem:[%s217 + $0x8] sm:$0xff]
        %v248 = vld [vmem:[%s217 + $0x18] sm:$0xff]
        %v249 = vadd.f32 %v245, %v247
        %v250 = vadd.f32 %v246, %v248
        %251 = vadd.xlane.f32.xlu0 %v249
        %v252 = vpop.xlane.xlu0 %251
        %253 = vadd.xlane.f32.xlu0 %v250
        %v254 = vpop.xlane.xlu0 %253
        %v255 = vmul.f32 %v252, 0.00390625
        %v256 = vmul.f32 %v254, 0.00390625
        %v257 = vld [vmem:[%s1] sm:$0xff]
        %v258 = vld [vmem:[%s1 + $0x8] sm:$0xff]
        %v259 = vmul.f32 %v257, %v255
        %v260 = vmul.f32 %v258, %v256
        %vm261 = vcmask 31744
        %v262 = vsel %vm261, %v259, 0.0
        %v263 = vsel %vm261, %v260, 0.0
        %v264 = vadd.f32 %v262, %v263
        %v265 = vrot.slane %v264, 4
        %v266 = vadd.f32 %v264, %v265
        %v267 = vrot.slane %v266, 2
        %v268 = vadd.f32 %v266, %v267
        %v269 = vrot.slane %v268, 1
        %v270 = vadd.f32 %v268, %v269
        %v271 = vld [vmem:[%s2] sm:$0x1]
        %v272 = vadd.f32 %v270, %v271
        %v273 = vxor.u32 %v272, 2147483648
        %v274 = vmul.f32 %v273, 1.442695
        %v275 = vpow.pop %v274
        %v276 = vadd.f32 %v275, 1.0
        %v277 = vrcp.pop %v276
        %v278 = vmul.f32 %v276, %v277
        %v279 = vsub.f32 1.0, %v278
        %v280 = vmul.f32 %v277, %v279
        %v281 = vadd.f32 %v277, %v280
        %vm282 = vweird.f32 %v276
        %vm283 = vweird.f32 %v277
        %vm284 = vmor %vm282, %vm283
        %v285 = vsel %vm284, %v277, %v281
        %v286 = vand.u32 2147483647, %v276
        %vm287 = vcmp.eq.f32.partialorder %v286, 8.507059e+37
        %v288 = vand.u32 %v276, 2147483648
        %v289 = vor.u32 1.1754944e-38, %v288
        %v290 = vsel %vm287, %v289, %v285
        %v291 = vmul.f32 1.0, %v290
        %v292 = vmul.f32 %v272, %v291
        %v293 = vld [vmem:[%s3] sm:$0xff]
        %v294 = vld [vmem:[%s3 + $0x8] sm:$0xff]
        %v295 = vperm.slane %v292, 0
        %v296 = vmul.f32 %v293, %v295
        %v297 = vmul.f32 %v294, %v295
        %v298 = vsel %vm261, %v296, 0.0
        %299 = vadd.xlane.f32.xlu0 %v298
        %v300 = vpop.xlane.xlu0 %299
        %v301 = vsel %vm261, %v297, 0.0
        %302 = vadd.xlane.f32.xlu0 %v301
        %v303 = vpop.xlane.xlu0 %302
        %v304 = vld [vmem:[%s4] sm:$0xff]
        %v305 = vld [vmem:[%s4 + $0x8] sm:$0xff]
        %v306 = vadd.f32 %v300, %v304
        %v307 = vadd.f32 %v303, %v305
        %v308 = vxor.u32 %v306, 2147483648
        %v309 = vxor.u32 %v307, 2147483648
        %v310 = vmul.f32 %v308, 1.442695
        %v311 = vpow.pop %v310
        %v312 = vmul.f32 %v309, 1.442695
        %v313 = vpow.pop %v312
        %v314 = vadd.f32 %v311, 1.0
        %v315 = vadd.f32 %v313, 1.0
        %v316 = vrcp.pop %v314
        %v317 = vmul.f32 %v314, %v316
        %v318 = vsub.f32 1.0, %v317
        %v319 = vmul.f32 %v316, %v318
        %v320 = vadd.f32 %v316, %v319
        %vm321 = vweird.f32 %v314
        %vm322 = vweird.f32 %v316
        %vm323 = vmor %vm321, %vm322
        %v324 = vsel %vm323, %v316, %v320
        %v325 = vand.u32 2147483647, %v314
        %vm326 = vcmp.eq.f32.partialorder %v325, 8.507059e+37
        %v327 = vand.u32 %v314, 2147483648
        %v328 = vor.u32 1.1754944e-38, %v327
        %v329 = vsel %vm326, %v328, %v324
        %v330 = vmul.f32 1.0, %v329
        %v331 = vrcp.pop %v315
        %v332 = vmul.f32 %v315, %v331
        %v333 = vsub.f32 1.0, %v332
        %v334 = vmul.f32 %v331, %v333
        %v335 = vadd.f32 %v331, %v334
        %vm336 = vweird.f32 %v315
        %vm337 = vweird.f32 %v331
        %vm338 = vmor %vm336, %vm337
        %v339 = vsel %vm338, %v331, %v335
        %v340 = vand.u32 2147483647, %v315
        %vm341 = vcmp.eq.f32.partialorder %v340, 8.507059e+37
        %v342 = vand.u32 %v315, 2147483648
        %v343 = vor.u32 1.1754944e-38, %v342
        %v344 = vsel %vm341, %v343, %v339
        %v345 = vmul.f32 1.0, %v344
        %v346 = vld [vmem:[%s217] sm:$0xff]
        %v347 = vld [vmem:[%s217 + $0x10] sm:$0xff]
        %349 = vset.pattern.permute.xlu0 0
        %350 = vperm.xlu0 %349, %v330
        %v351 = vpop.permute.xlu0 %350
        %354 = vset.pattern.permute.xlu0 0
        %355 = vperm.xlu0 %354, %v345
        %v356 = vpop.permute.xlu0 %355
        %v358 = vmul.f32 %v346, %v351
        %v359 = vmul.f32 %v247, %v351
        %v360 = vmul.f32 %v347, %v356
        %v361 = vmul.f32 %v248, %v356
        %362 = vst [vmem:[%s244] sm:$0xff] %v358
        %363 = vst [vmem:[%s244 + $0x8] sm:$0xff] %v359
        %364 = vst [vmem:[%s244 + $0x10] sm:$0xff] %v360
        %365 = vst [vmem:[%s244 + $0x18] sm:$0xff] %v361
        %s366 = sand.u32 %s140, 1
        %s367 = scalar_lea.sflag [#allocation4], %s366
        %s368 = sand.u32 %s140, 1
        %s369 = smul.addr %s368, 32
        %s370 = scalar_lea.vmem [#allocation5], %s369
        // Predicated region
        $region45: #{tpu_custom_call.1} parent=39 // pred_check
          %p371 = pneg %p150
        $region46: #{tpu_custom_call.1} parent=39 // pred_check_branch
          %373 = sbr.rel (%p371) target = $region48
        $region47: #{tpu_custom_call.1} parent=39 // pred_region
          %375 = vsyncadd %s367, 0
          %s376 = smul.addr %s22, 4
          %s377 = smul.addr %s376, 8
          %s378 = scalar_lea.hbm %s5, %s377
          %s379 = sshll.u32 %s370, 4
          %s380 = int_to_ptr.vmem [resolvable:$true] %s379
          %s381 = sshll.u32 %s378, 4
          %s382 = int_to_ptr.hbm [resolvable:$true] %s381
          %387 = dma.vmem_to_hbm [thread:$0]  %s380, 512, %s382, %s367, 256, 256, 16
        $region48: #{tpu_custom_call.1} parent=39 // pred_fallthru
          _
      $region40: #{tpu_custom_call.1} parent=5 // pred_fallthru
        _
      %p388 = scmp.le.s32.totalorder 2, %s17
      // Predicated region
      $region49: #{tpu_custom_call.1} parent=5 // pred_check
        %p389 = pneg %p388
      $region50: #{tpu_custom_call.1} parent=5 // pred_check_branch
        %391 = sbr.rel (%p389) target = $region52
      $region51: #{tpu_custom_call.1} parent=5 // pred_region
        %s392 = ssub.s32 %s17, 2
        // Predicated region
        $region53: #{tpu_custom_call.1} parent=51 // pred_check
          %p393 = pneg %p156
        $region54: #{tpu_custom_call.1} parent=51 // pred_check_branch
          %395 = sbr.rel (%p393) target = $region56
        $region55: #{tpu_custom_call.1} parent=51 // pred_region
          %s396 = sand.u32 %s141, 1
          %s397 = scalar_lea.sflag [#allocation4], %s396
          %s398 = sand.u32 %s141, 1
          %s399 = smul.addr %s398, 32
          %s400 = scalar_lea.vmem [#allocation5], %s399
          %402 = dma.done %s397, 512
        $region56: #{tpu_custom_call.1} parent=51 // pred_fallthru
          _
      $region52: #{tpu_custom_call.1} parent=5 // pred_fallthru
        _
    $region6: #{tpu_custom_call.1} parent=1 // loop_footer
      %s21 = sadd.s32 1, %s17
    $region7: #{tpu_custom_call.1} parent=1 // loop_footer_branch
      %16 = sbr.rel target = $region3
    $region8: #{tpu_custom_call.1} parent=1 // loop_exit
      _
    %403 = vsyncpa [#allocation3], 1
    %s404 = scalar_lea.sflag [#allocation3], 1
    %405 = vsyncpa %s404, 1
    %406 = vsyncpa [#allocation4], 1
    %s407 = scalar_lea.sflag [#allocation4], 1
    %408 = vsyncpa %s407, 1

</llo_original>
